<compile_context>
chip_gen: v7x
topology: tpu7x:2x2x1
jax: 0.10.0
libtpu: 0.0.40
codegen_flags: <defaults>
</compile_context>

<pallas_src>
import jax
import jax.numpy as jnp
from jax.experimental import pallas as pl
from jax.experimental.pallas import tpu as pltpu

N_PAD = 128      # lane-dense padded output width (one full vreg lane span)
N_CLASSES = 3    # true number of output classes


def multinli_kernel(x_ref, wt_ref, b_ref, o_ref):
    # x_ref : (B, S, E)    activations
    # wt_ref: (E, N_PAD)   pre-transposed, zero-padded weight with 1/S folded in
    # b_ref : (1, N_PAD)   zero-padded bias
    # o_ref : (B, N_PAD)   lane-dense padded output
    x_sum = jnp.sum(x_ref[...], axis=1)                          # (B, E) sublane reduce
    logits = jnp.dot(x_sum, wt_ref[...],
                     preferred_element_type=jnp.float32)         # (B, N_PAD) one MXU push
    logits = logits + b_ref[...]                                 # broadcast (1, N_PAD)
    # sigmoid(z) = 1 / (1 + exp(-z)); exp and reciprocal both land on the EUP.
    sig = pl.reciprocal(1.0 + jnp.exp(-logits), approx=True)
    o_ref[...] = sig.astype(o_ref.dtype)                         # single unmasked store


def prepare_params(w, b, seq_len, dtype=jnp.float32):
    """One-time parameter prep, hoisted out of the per-call path.

    w: (3, E) torch-Linear layout, b: (3,). Returns:
      w_t: (E, N_PAD) pre-transposed weight, scaled by 1/seq_len (the
           mean <-> Linear commute: sigmoid(mean(xW^T + b, axis=1))
           == sigmoid(sum(x, axis=1) @ (W^T / S) + b)).
      b_p: (1, N_PAD) zero-padded bias.
    """
    n_out, embed = w.shape
    w_t = jnp.zeros((embed, N_PAD), dtype=dtype).at[:, :n_out].set(w.T / seq_len)
    b_p = jnp.zeros((1, N_PAD), dtype=dtype).at[0, :n_out].set(b)
    return w_t, b_p


@jax.jit
def multinli_forward(x, w_t, b_p):
    """x: (B, S, E) f32; w_t/b_p from prepare_params(). Returns (B, 3)."""
    B, S, E = x.shape

    bytes_acc = (x.size + w_t.size + b_p.size + B * N_PAD) * 4
    cost = pl.CostEstimate(
        flops=2 * B * E * N_PAD + B * S * E,   # matmul + seq-sum
        transcendentals=2 * B * N_PAD,         # exp + reciprocal
        bytes_accessed=bytes_acc,
    )

    out_padded = pl.pallas_call(
        multinli_kernel,
        out_shape=jax.ShapeDtypeStruct((B, N_PAD), jnp.float32),
        in_specs=[
            pl.BlockSpec(memory_space=pltpu.MemorySpace.VMEM),
            pl.BlockSpec(memory_space=pltpu.MemorySpace.VMEM),
            pl.BlockSpec(memory_space=pltpu.MemorySpace.VMEM),
        ],
        out_specs=pl.BlockSpec(memory_space=pltpu.MemorySpace.VMEM),
        cost_estimate=cost,
    )(x, w_t, b_p)

    # Lane-dense (B, 128) store inside the kernel; the cheap 3-wide slice
    # happens out here and fuses under jit. Padded lanes hold sigmoid(0)=0.5
    # and are discarded.
    return out_padded[:, :N_CLASSES]


def multinli_reference(x, w, b):
    out = jnp.einsum("bse,oe->bso", x, w) + b[None, None, :]
    out = out.mean(axis=1)
    return jax.nn.sigmoid(out)


if __name__ == "__main__":
    # Small shapes consistent with the module: batch=2, seq=8, embedding_dim=32.
    B, S, E = 2, 8, 32
    vocab_size = 100  # unused by forward (matches unused __init__ arg)

    key = jax.random.PRNGKey(0)
    kx, kw, kb = jax.random.split(key, 3)

    x = jax.random.normal(kx, (B, S, E), dtype=jnp.float32)

    # Deterministic Linear init (uniform(-1/sqrt(E), 1/sqrt(E)), like PyTorch).
    bound = 1.0 / (E ** 0.5)
    w = jax.random.uniform(kw, (3, E), minval=-bound, maxval=bound,
                           dtype=jnp.float32)
    b = jax.random.uniform(kb, (3,), minval=-bound, maxval=bound,
                           dtype=jnp.float32)

    # One-time parameter prep (not in the per-call path).
    w_t, b_p = prepare_params(w, b, seq_len=S)
    w_t, b_p = jax.block_until_ready((w_t, b_p))

    out = jax.block_until_ready(multinli_forward(x, w_t, b_p))

    ref = multinli_reference(x, w, b)
    assert out.shape == (B, 3)
    # Tolerance accounts for the approximate EUP reciprocal in the sigmoid
    # epilogue (abs error ~1e-4 on denominators in (1, e^|z|)).
    assert jnp.allclose(out, ref, atol=1e-3, rtol=1e-3)

    print("KERNEL_OK")
</pallas_src>

<mosaic_0001>
module attributes {stable_mosaic.version = 11 : i64} {
  func.func @multinli_kernel(%arg0: memref<2x8x32xf32, #tpu.memory_space<vmem>>, %arg1: memref<32x128xf32, #tpu.memory_space<vmem>>, %arg2: memref<1x128xf32, #tpu.memory_space<vmem>>, %arg3: memref<2x128xf32, #tpu.memory_space<vmem>>) attributes {dimension_semantics = [], scalar_prefetch = 0 : i64, scratch_operands = 0 : i64, tpu.core_type = #tpu.core_type<tc>} {
    %c0 = arith.constant 0 : index
    %c0_0 = arith.constant 0 : index
    %c0_1 = arith.constant 0 : index
    %0 = vector.load %arg0[%c0, %c0_0, %c0_1] : memref<2x8x32xf32, #tpu.memory_space<vmem>>, vector<2x8x32xf32>
    %cst = arith.constant dense<0.000000e+00> : vector<2x32xf32>
    %1 = vector.multi_reduction <add>, %0, %cst [1] : vector<2x8x32xf32> to vector<2x32xf32>
    %c0_2 = arith.constant 0 : index
    %c0_3 = arith.constant 0 : index
    %2 = vector.load %arg1[%c0_2, %c0_3] : memref<32x128xf32, #tpu.memory_space<vmem>>, vector<32x128xf32>
    %cst_4 = arith.constant dense<0.000000e+00> : vector<2x128xf32>
    %3 = tpu.matmul %1, %2, %cst_4 {dimension_numbers = #tpu.dot_dimension_numbers<[1], [0], [0], [1], [0, 0, 1, 1], [], []>} : vector<2x32xf32>, vector<32x128xf32>, vector<2x128xf32> -> vector<2x128xf32>
    %c0_5 = arith.constant 0 : index
    %c0_6 = arith.constant 0 : index
    %4 = vector.load %arg2[%c0_5, %c0_6] : memref<1x128xf32, #tpu.memory_space<vmem>>, vector<1x128xf32>
    %5 = vector.broadcast %4 : vector<1x128xf32> to vector<2x128xf32>
    %6 = arith.addf %3, %5 : vector<2x128xf32>
    %cst_7 = arith.constant 0.000000e+00 : f32
    %7 = vector.broadcast %cst_7 : f32 to vector<2x128xf32>
    %8 = arith.subf %7, %6 : vector<2x128xf32>
    %9 = math.exp %8 : vector<2x128xf32>
    %cst_8 = arith.constant 1.000000e+00 : f32
    %10 = vector.broadcast %cst_8 : f32 to vector<2x128xf32>
    %11 = arith.addf %10, %9 : vector<2x128xf32>
    %12 = tpu.reciprocal %11 {approx = true} : vector<2x128xf32> -> vector<2x128xf32>
    %c0_9 = arith.constant 0 : index
    %c0_10 = arith.constant 0 : index
    %13 = vector.load %arg3[%c0_9, %c0_10] : memref<2x128xf32, #tpu.memory_space<vmem>>, vector<2x128xf32>
    tpu.vector_store %arg3[%c0_9, %c0_10], %12 {strides = array<i32>} : memref<2x128xf32, #tpu.memory_space<vmem>>, vector<2x128xf32>,
    return
  }
}

</mosaic_0001>

<llo_original>
// kernel: multinli_forward.1
$region0: #{multinli_forward.1}
  #allocation0 [shape = 'u32[]', space=smem, size = 0x4, offset = 0x4, fixed_abs, tag = 'smem constant byte address 0x4 - core index']
  #allocation1 [shape = 'u32[144,128]{1,0:T(1,128)}', space=vmem, size = 0x12000, scoped, tag = 'internal scratch']
  %s0 = inlined_call_operand.hbm [shape: f32[2,8,32], index: 0, kind: input, shape index: {}]
  %s1 = inlined_call_operand.hbm [shape: f32[32,128], index: 1, kind: input, shape index: {}]
  %s2 = inlined_call_operand.vmem [shape: f32[1,128], index: 2, kind: input, shape index: {}]
  %s3 = inlined_call_operand.hbm [shape: f32[2,128], index: 3, kind: output, shape index: {}]
  %s4 = sld [smem:[#allocation0]]
  $region30: #{multinli_forward.1} parent=0
    _
  %s6 = ssub.s32 1, %s4
  %s7 = scalar_select 0, %s6, %s4
  $region1: #{multinli_forward.1} parent=0
    #allocation2 [shape = 'u8[8192]{0}', space=vmem, size = 0x2000, scoped, tag = 'input window, operand 0, single buffered']
    #allocation3 [shape = 's32[1]{0}', space=sflag, size = 0x4, scoped, tag = 'scoped memory for multinli_forward.1']
    #allocation4 [shape = 's32[1]{0}', space=sflag, size = 0x4, scoped, tag = 'scoped memory for multinli_forward.1']
    #allocation5 [shape = 'u8[16384]{0}', space=vmem, size = 0x4000, scoped, tag = 'input window, operand 1, single buffered']
    #allocation6 [shape = 's32[1]{0}', space=sflag, size = 0x4, scoped, tag = 'scoped memory for multinli_forward.1']
    #allocation7 [shape = 'u8[1024]{0}', space=vmem, size = 0x400, scoped, tag = 'output window, operand 0, single buffered']
    %8 = vsyncpa [#allocation3], 0
    %9 = vsyncpa [#allocation6], 0
    %10 = vsyncpa [#allocation4], 0
    // Predicated region
    $region2: #{multinli_forward.1} parent=1 // pred_check
      _
    $region3: #{multinli_forward.1} parent=1 // pred_check_branch
      %12 = sbr.rel (0) target = $region5
    $region4: #{multinli_forward.1} parent=1 // pred_region
      %s14 = ssub.s32 256, 256
      %15 = vsyncadd [#allocation3], %s14
      %s16 = sshll.u32 [#allocation2], 4
      %s17 = int_to_ptr.vmem [resolvable:$true] %s16
      %22 = dma.hbm_to_vmem [thread:$0]  %s0, 256, %s17, [#allocation3], 128, 128, 8
    $region5: #{multinli_forward.1} parent=1 // pred_fallthru
      _
    // Predicated region
    $region6: #{multinli_forward.1} parent=1 // pred_check
      _
    $region7: #{multinli_forward.1} parent=1 // pred_check_branch
      %24 = sbr.rel (0) target = $region9
    $region8: #{multinli_forward.1} parent=1 // pred_region
      %s26 = ssub.s32 512, 512
      %27 = vsyncadd [#allocation6], %s26
      %s28 = sshll.u32 [#allocation5], 4
      %s29 = int_to_ptr.vmem [resolvable:$true] %s28
      %34 = dma.hbm_to_vmem [thread:$0]  %s1, 512, %s29, [#allocation6], 128, 128, 8
    $region9: #{multinli_forward.1} parent=1 // pred_fallthru
      _
    // Predicated region
    $region10: #{multinli_forward.1} parent=1 // pred_check
      _
    $region11: #{multinli_forward.1} parent=1 // pred_check_branch
      %36 = sbr.rel (0) target = $region13
    $region12: #{multinli_forward.1} parent=1 // pred_region
      _
    $region13: #{multinli_forward.1} parent=1 // pred_fallthru
      _
    // Predicated region
    $region14: #{multinli_forward.1} parent=1 // pred_check
      _
    $region15: #{multinli_forward.1} parent=1 // pred_check_branch
      %38 = sbr.rel (0) target = $region17
    $region16: #{multinli_forward.1} parent=1 // pred_region
      %39 = dma.done [#allocation3], 256
    $region17: #{multinli_forward.1} parent=1 // pred_fallthru
      _
    // Predicated region
    $region18: #{multinli_forward.1} parent=1 // pred_check
      _
    $region19: #{multinli_forward.1} parent=1 // pred_check_branch
      %41 = sbr.rel (0) target = $region21
    $region20: #{multinli_forward.1} parent=1 // pred_region
      %42 = dma.done [#allocation6], 512
    $region21: #{multinli_forward.1} parent=1 // pred_fallthru
      _
    %v43 = vld [vmem:[#allocation2] sm:$0xff]
    %v44 = vld [vmem:[#allocation2 + $0x8] sm:$0xff]
    %vm45 = vcmask 261120
    %v46 = vsel %vm45, %v43, 0.0
    %v47 = vrot.slane %v46, 4
    %v48 = vadd.f32 %v46, %v47
    %v49 = vrot.slane %v48, 2
    %v50 = vadd.f32 %v48, %v49
    %v51 = vrot.slane %v50, 1
    %v52 = vadd.f32 %v50, %v51
    %v53 = vsel %vm45, %v44, 0.0
    %v54 = vrot.slane %v53, 4
    %v55 = vadd.f32 %v53, %v54
    %v56 = vrot.slane %v55, 2
    %v57 = vadd.f32 %v55, %v56
    %v58 = vrot.slane %v57, 1
    %v59 = vadd.f32 %v57, %v58
    %v60 = vld [vmem:[#allocation5] sm:$0xff]
    %v61 = vld [vmem:[#allocation5 + $0x8] sm:$0xff]
    %v62 = vld [vmem:[#allocation5 + $0x10] sm:$0xff]
    %v63 = vld [vmem:[#allocation5 + $0x18] sm:$0xff]
    %v64 = vld [vmem:[%s2] sm:$0x1]
    %v66 = vlaneseq
    %v67 = vshrl.u32 %v66, 7
    %v68 = vsub.s32 0, %v67
    %v69 = vrot.slane %v64, %v68
    %vm73 = vcmask 1041409
    %v74 = vsel %vm73, %v59, %v52
    %v75 = vsel %vm45, %v74, 0
    %77 = vmatprep.subr.mxu0 0.0
    %78 = vmatpush1.msra.mxu0 %v60
    %79 = vmatprep.subr.mxu0 0.0
    %80 = vmatpush1.msra.mxu0 %v61
    %81 = vmatprep.subr.mxu0 0.0
    %82 = vmatpush1.msra.mxu0 %v62
    %83 = vmatprep.subr.mxu0 0.0
    %84 = vmatpush1.msra.mxu0 %v63
    %85 = vmatprep.subr.mxu0 0.0
    %86 = vmatpush1.msra.mxu0 0.0
    %87 = vmatprep.subr.mxu0 0.0
    %88 = vmatpush1.msra.mxu0 0.0
    %89 = vmatprep.subr.mxu0 0.0
    %90 = vmatpush1.msra.mxu0 0.0
    %91 = vmatprep.subr.mxu0 0.0
    %92 = vmatpush1.msra.mxu0 0.0
    %93 = vmatprep.subr.mxu0 0.0
    %94 = vmatpush1.msra.mxu0 0.0
    %95 = vmatprep.subr.mxu0 0.0
    %96 = vmatpush1.msra.mxu0 0.0
    %97 = vmatprep.subr.mxu0 0.0
    %98 = vmatpush1.msra.mxu0 0.0
    %99 = vmatprep.subr.mxu0 0.0
    %100 = vmatpush1.msra.mxu0 0.0
    %101 = vmatprep.subr.mxu0 0.0
    %102 = vmatpush1.msra.mxu0 0.0
    %103 = vmatprep.subr.mxu0 0.0
    %104 = vmatpush1.msra.mxu0 0.0
    %105 = vmatprep.subr.mxu0 0.0
    %106 = vmatpush1.msra.mxu0 0.0
    %107 = vmatprep.subr.mxu0 0.0
    %108 = vmatpush1.msra.mxu0 0.0
    %109 = vmatprep.subr.mxu0 0.0
    %110 = vmatpush1.msra.mxu0 0.0
    %111 = vmatprep.subr.mxu0 0.0
    %112 = vmatpush1.msra.mxu0 0.0
    %113 = vmatprep.subr.mxu0 0.0
    %114 = vmatpush1.msra.mxu0 0.0
    %115 = vmatprep.subr.mxu0 0.0
    %116 = vmatpush1.msra.mxu0 0.0
    %117 = vmatprep.subr.mxu0 0.0
    %118 = vmatpush1.msra.mxu0 0.0
    %119 = vmatprep.subr.mxu0 0.0
    %120 = vmatpush1.msra.mxu0 0.0
    %121 = vmatprep.subr.mxu0 0.0
    %122 = vmatpush1.msra.mxu0 0.0
    %123 = vmatprep.subr.mxu0 0.0
    %124 = vmatpush1.msra.mxu0 0.0
    %125 = vmatprep.subr.mxu0 0.0
    %126 = vmatpush1.msra.mxu0 0.0
    %127 = vmatprep.subr.mxu0 0.0
    %128 = vmatpush1.msra.mxu0 0.0
    %129 = vmatprep.subr.mxu0 0.0
    %130 = vmatpush1.msra.mxu0 0.0
    %131 = vmatprep.subr.mxu0 0.0
    %132 = vmatpush1.msra.mxu0 0.0
    %133 = vmatprep.subr.mxu0 0.0
    %134 = vmatpush1.msra.mxu0 0.0
    %135 = vmatprep.subr.mxu0 0.0
    %136 = vmatpush1.msra.mxu0 0.0
    %137 = vmatprep.subr.mxu0 0.0
    %138 = vmatpush1.msra.mxu0 0.0
    %139 = vmatprep.subr.mxu0 0.0
    %140 = vmatpush1.msra.mxu0 0.0
    %141 = vmatprep.mubr.f32.mxu0 0.0
    %142 = vmatmul.mubr.f32.gmra.mrb[0].mxu0 %v75
    %v143 = vpop.f32.mrb[0].mxu0
    %v144 = vadd.f32 %v69, %v143
    %v145 = vpop.f32.mrb[0].mxu0
    %146 = vdwg.mxu0
    %v147 = vsub.f32 0.0, %v144
    %v148 = vmul.f32 %v147, 1.442695
    %v149 = vpow.pop %v148
    %v150 = vadd.f32 %v149, 1.0
    %v151 = vrcp.pop %v150
    %152 = vst [vmem:[#allocation7] sm:$0x3] %v151
    // Predicated region
    $region22: #{multinli_forward.1} parent=1 // pred_check
      _
    $region23: #{multinli_forward.1} parent=1 // pred_check_branch
      %154 = sbr.rel (0) target = $region25
    $region24: #{multinli_forward.1} parent=1 // pred_region
      %s156 = ssub.s32 32, 32
      %157 = vsyncadd [#allocation4], %s156
      %s159 = sshll.u32 [#allocation7], 4
      %s160 = int_to_ptr.vmem [resolvable:$true] %s159
      %162 = dma.vmem_to_hbm [thread:$0]  %s160, 32, %s3, [#allocation4]
    $region25: #{multinli_forward.1} parent=1 // pred_fallthru
      _
    // Predicated region
    $region26: #{multinli_forward.1} parent=1 // pred_check
      _
    $region27: #{multinli_forward.1} parent=1 // pred_check_branch
      %164 = sbr.rel (0) target = $region29
    $region28: #{multinli_forward.1} parent=1 // pred_region
      %165 = dma.done [#allocation4], 32
    $region29: #{multinli_forward.1} parent=1 // pred_fallthru
      _
    %166 = vsyncpa [#allocation3], 1
    %167 = vsyncpa [#allocation6], 1
    %168 = vsyncpa [#allocation4], 1

</llo_original>
